<compile_context>
chip_gen: v6e
topology: v6e:2x2x1
jax: 0.10.0
libtpu: 0.0.40
codegen_flags: <defaults>
</compile_context>

<pallas_src>
import functools

import jax
import jax.numpy as jnp
from jax.experimental import pallas as pl
from jax.experimental.pallas import tpu as pltpu


def _conv_bn_relu_kernel(patches_ref, w_ref, shift_ref, o_ref, *, oc):
    # patches_ref: (TM, Kfeat) bf16 (true Kfeat; no HBM lane padding)
    # w_ref:       (Kfeat, OCp) bf16, BN scale pre-folded
    # shift_ref:   (1, OCp) f32
    # o_ref:       (TM, OC)  — real output channels only
    acc = jnp.dot(patches_ref[...], w_ref[...], preferred_element_type=jnp.float32)
    y = jnp.maximum(acc + shift_ref[...], 0.0)
    o_ref[...] = y[:, :oc].astype(o_ref.dtype)


def _round_up(x, m):
    return ((x + m - 1) // m) * m


def _vmem_capacity_bytes():
    try:
        return int(pltpu.get_tpu_info().vmem_capacity_bytes)
    except Exception:
        return 64 * 1024 * 1024  # v7x per-TC floor; conservative for v5e/v6e


def _choose_tm(m, fits):
    # Largest MXU-friendly tile that fits VMEM, divides M, and leaves >= 4 grid steps
    # (even count preferred) so v7x's 2 TensorCores each get >= 2 overlapped steps.
    cands = [t for t in (1024, 512, 256, 128) if fits(t)] or [128]
    for tm in cands:
        if m % tm == 0 and m // tm >= 4 and (m // tm) % 2 == 0:
            return tm
    for tm in cands:
        if m % tm == 0 and m // tm >= 4:
            return tm
    for tm in cands:
        if m % tm == 0 and m // tm >= 2:
            return tm
    for tm in cands:
        if m % tm == 0:
            return tm
    for tm in cands:  # remainder-padded fallback
        if m >= 4 * tm:
            return tm
    return cands[-1]


def _im2col_nhwc(x_nhwc, kh, kw, stride, padding):
    # x_nhwc: (N, H, W, C) -> (N*OH*OW, KH*KW*C); feature order (kh, kw, c).
    n, h, w, c = x_nhwc.shape
    oh = (h + 2 * padding - kh) // stride + 1
    ow = (w + 2 * padding - kw) // stride + 1
    xp = jnp.pad(x_nhwc, ((0, 0), (padding, padding), (padding, padding), (0, 0)))
    cols = []
    for i in range(kh):
        for j in range(kw):
            cols.append(xp[:, i:i + (oh - 1) * stride + 1:stride,
                              j:j + (ow - 1) * stride + 1:stride, :])
    cols = jnp.stack(cols, axis=3)                     # (N, OH, OW, KH*KW, C)
    return cols.reshape(n * oh * ow, kh * kw * c), oh, ow


@functools.partial(jax.jit, static_argnames=("stride", "padding", "eps"))
def conv_subunit_forward(x, conv_w, conv_b, bn_gamma, bn_beta, bn_mean, bn_var,
                         *, stride=1, padding=1, eps=1e-5):
    n, c, h, w = x.shape
    oc, _, kh, kw = conv_w.shape
    kfeat = kh * kw * c

    # Layout change on the 1x input (NOT on the 9x patch matrix): NCHW -> NHWC, bf16.
    x_nhwc = x.astype(jnp.bfloat16).transpose(0, 2, 3, 1)
    patches, oh, ow = _im2col_nhwc(x_nhwc, kh, kw, stride, padding)  # (M, Kfeat) bf16
    m = patches.shape[0]

    # Fold BN (running stats) + conv bias on the wrapper side.
    inv_std = 1.0 / jnp.sqrt(bn_var + eps)
    scale = bn_gamma * inv_std                                    # (OC,)
    shift = bn_beta + (conv_b - bn_mean) * scale                  # (OC,)

    # Weight (tiny): match (kh, kw, c) feature order, fold scale, pad OC lanes only.
    oc_pad = _round_up(oc, 128)
    w_mat = (conv_w.transpose(0, 2, 3, 1).reshape(oc, kfeat) * scale[:, None]).T
    w_mat = jnp.pad(w_mat, ((0, 0), (0, oc_pad - oc))).astype(jnp.bfloat16)
    shift_p = jnp.pad(shift, (0, oc_pad - oc)).reshape(1, oc_pad).astype(jnp.float32)

    # --- VMEM-aware tiling (v7x: 64 MiB; v5e/v6e: 128 MiB) ---
    cap = _vmem_capacity_bytes()
    budget = int(0.7 * cap)
    kf_lane = _round_up(kfeat, 128)   # in-VMEM lane padding of the patch tile
    kf_sub = _round_up(kfeat, 16)     # bf16 sublane padding of the resident weight
    oc_lane = _round_up(oc, 128)      # in-VMEM lane padding of the output tile

    def vmem_needed(tm):
        return (2 * tm * kf_lane * 2        # bf16 patch tile, double-buffered (streaming)
                + kf_sub * oc_pad * 2       # bf16 weight, grid-invariant -> single buffer
                + 8 * oc_pad * 4            # shift, grid-invariant
                + 2 * tm * oc_lane * 4)     # f32 output tile, double-buffered

    tm = _choose_tm(m, lambda t: vmem_needed(t) <= budget)
    m_pad = _round_up(m, tm)
    if m_pad != m:  # fallback only; _choose_tm prefers divisors of M
        patches = jnp.pad(patches, ((0, m_pad - m), (0, 0)))
    grid_m = m_pad // tm

    # Request = need + one extra buffer for the invariants (in case they get
    # double-buffered anyway) + slack; no double-double counting.
    need = vmem_needed(tm)
    vmem_limit = int(need * 1.25) + kf_sub * oc_pad * 2 + 8 * oc_pad * 4 + (1 << 20)
    vmem_limit = int(min(max(vmem_limit, 4 * 1024 * 1024), int(0.9 * cap)))

    out = pl.pallas_call(
        functools.partial(_conv_bn_relu_kernel, oc=oc),
        out_shape=jax.ShapeDtypeStruct((m_pad, oc), x.dtype),
        grid_spec=pltpu.PrefetchScalarGridSpec(
            num_scalar_prefetch=0,
            grid=(grid_m,),
            in_specs=[
                # Last block dim == full array dim, so no 128-multiple needed in HBM.
                pl.BlockSpec((tm, kfeat), lambda i: (i, 0)),       # streaming patches
                pl.BlockSpec((kfeat, oc_pad), lambda i: (0, 0)),   # resident weight
                pl.BlockSpec((1, oc_pad), lambda i: (0, 0)),       # resident shift
            ],
            out_specs=pl.BlockSpec((tm, oc), lambda i: (i, 0)),    # real OC only
        ),
        compiler_params=pltpu.CompilerParams(
            dimension_semantics=("parallel",),
            vmem_limit_bytes=vmem_limit,
        ),
    )(patches, w_mat, shift_p)

    if m_pad != m:
        out = out[:m]
    # (N*OH*OW, OC) -> NCHW to match the PyTorch module. (If the consumer accepts
    # NHWC, this transpose can be skipped to save an HBM pass.)
    return out.reshape(n, oh, ow, oc).transpose(0, 3, 1, 2)


if __name__ == "__main__":
    key = jax.random.PRNGKey(0)
    k1, k2, k3, k4, k5, k6, k7 = jax.random.split(key, 7)

    # ConvSubunit(input_size=4, output_size=8, filter_size=3, stride=1, padding=1, dropout=0.1)
    N, C, H, W = 2, 4, 16, 16
    OC, K = 8, 3
    stride, padding = 1, 1

    x = jax.random.normal(k1, (N, C, H, W), dtype=jnp.float32)
    conv_w = 0.1 * jax.random.normal(k2, (OC, C, K, K), dtype=jnp.float32)
    conv_b = 0.1 * jax.random.normal(k3, (OC,), dtype=jnp.float32)
    bn_gamma = 1.0 + 0.1 * jax.random.normal(k4, (OC,), dtype=jnp.float32)
    bn_beta = 0.1 * jax.random.normal(k5, (OC,), dtype=jnp.float32)
    bn_mean = 0.1 * jax.random.normal(k6, (OC,), dtype=jnp.float32)
    bn_var = jnp.abs(jax.random.normal(k7, (OC,), dtype=jnp.float32)) + 0.5

    y = conv_subunit_forward(x, conv_w, conv_b, bn_gamma, bn_beta, bn_mean, bn_var,
                             stride=stride, padding=padding)
    jax.block_until_ready(y)
    assert y.shape == (N, OC, H, W), y.shape

    # Eval-mode reference (f32); loose tolerance because patches/weights are bf16.
    ref = jax.lax.conv_general_dilated(
        x, conv_w, window_strides=(stride, stride),
        padding=[(padding, padding), (padding, padding)],
        dimension_numbers=("NCHW", "OIHW", "NCHW"))
    ref = ref + conv_b[None, :, None, None]
    ref = (ref - bn_mean[None, :, None, None]) * (
        bn_gamma[None, :, None, None] / jnp.sqrt(bn_var + 1e-5)[None, :, None, None]
    ) + bn_beta[None, :, None, None]
    ref = jnp.maximum(ref, 0.0)
    err = float(jnp.max(jnp.abs(y - ref)))
    assert err < 0.1, f"max abs err vs reference: {err}"
    assert bool(jnp.all(jnp.isfinite(y))) and bool(jnp.all(y >= 0.0))
    print("KERNEL_OK")
</pallas_src>

<mosaic_0001>
module attributes {stable_mosaic.version = 11 : i64} {
  func.func @_conv_bn_relu_kernel(%arg0: i32, %arg1: memref<128x36xbf16, #tpu.memory_space<vmem>>, %arg2: memref<36x128xbf16, #tpu.memory_space<vmem>>, %arg3: memref<1x128xf32, #tpu.memory_space<vmem>>, %arg4: memref<128x8xf32, #tpu.memory_space<vmem>>) attributes {dimension_semantics = [#tpu.dimension_semantics<parallel>], iteration_bounds = array<i64: 4>, scalar_prefetch = 0 : i64, scratch_operands = 0 : i64, tpu.core_type = #tpu.core_type<tc>, window_params = [{transform_indices = @transform_0, window_bounds = array<i64: 128, 36>}, {pipeline_mode = #tpu.pipeline_mode<synchronous>, transform_indices = @transform_1, window_bounds = array<i64: 36, 128>}, {pipeline_mode = #tpu.pipeline_mode<synchronous>, transform_indices = @transform_2, window_bounds = array<i64: 1, 128>}, {transform_indices = @transform_3, window_bounds = array<i64: 128, 8>}]} {
    %c0 = arith.constant 0 : index
    %c0_0 = arith.constant 0 : index
    %0 = vector.load %arg1[%c0, %c0_0] : memref<128x36xbf16, #tpu.memory_space<vmem>>, vector<128x36xbf16>
    %c0_1 = arith.constant 0 : index
    %c0_2 = arith.constant 0 : index
    %1 = vector.load %arg2[%c0_1, %c0_2] : memref<36x128xbf16, #tpu.memory_space<vmem>>, vector<36x128xbf16>
    %cst = arith.constant dense<0.000000e+00> : vector<128x128xf32>
    %2 = tpu.matmul %0, %1, %cst {dimension_numbers = #tpu.dot_dimension_numbers<[1], [0], [0], [1], [0, 0, 1, 1], [], []>} : vector<128x36xbf16>, vector<36x128xbf16>, vector<128x128xf32> -> vector<128x128xf32>
    %c0_3 = arith.constant 0 : index
    %c0_4 = arith.constant 0 : index
    %3 = vector.load %arg3[%c0_3, %c0_4] : memref<1x128xf32, #tpu.memory_space<vmem>>, vector<1x128xf32>
    %4 = vector.broadcast %3 : vector<1x128xf32> to vector<128x128xf32>
    %5 = arith.addf %2, %4 : vector<128x128xf32>
    %cst_5 = arith.constant 0.000000e+00 : f32
    %6 = vector.broadcast %cst_5 : f32 to vector<128x128xf32>
    %7 = arith.maximumf %5, %6 : vector<128x128xf32>
    %8 = vector.extract_strided_slice %7 {offsets = [0, 0], sizes = [128, 8], strides = [1, 1]} : vector<128x128xf32> to vector<128x8xf32>
    %c0_6 = arith.constant 0 : index
    %c0_7 = arith.constant 0 : index
    %9 = vector.load %arg4[%c0_6, %c0_7] : memref<128x8xf32, #tpu.memory_space<vmem>>, vector<128x8xf32>
    tpu.vector_store %arg4[%c0_6, %c0_7], %8 {strides = array<i32>} : memref<128x8xf32, #tpu.memory_space<vmem>>, vector<128x8xf32>,
    return
  }
  func.func @transform_0(%arg0: i32) -> (i32, i32) {
    %c0_i32 = arith.constant 0 : i32
    %c0_i32_0 = arith.constant 0 : i32
    return %arg0, %c0_i32 : i32, i32
  }
  func.func @transform_1(%arg0: i32) -> (i32, i32) {
    %c0_i32 = arith.constant 0 : i32
    %c0_i32_0 = arith.constant 0 : i32
    %c0_i32_1 = arith.constant 0 : i32
    return %c0_i32, %c0_i32_0 : i32, i32
  }
  func.func @transform_2(%arg0: i32) -> (i32, i32) {
    %c0_i32 = arith.constant 0 : i32
    %c0_i32_0 = arith.constant 0 : i32
    %c0_i32_1 = arith.constant 0 : i32
    return %c0_i32, %c0_i32_0 : i32, i32
  }
  func.func @transform_3(%arg0: i32) -> (i32, i32) {
    %c0_i32 = arith.constant 0 : i32
    %c0_i32_0 = arith.constant 0 : i32
    return %arg0, %c0_i32 : i32, i32
  }
}

</mosaic_0001>

<llo_original>
// kernel: conv_subunit_forward.1
$region0: #{conv_subunit_forward.1}
  #allocation0 [shape = 'u32[]', space=smem, size = 0x4, offset = 0x4, fixed_abs, tag = 'smem constant byte address 0x4 - core index']
  #allocation1 [shape = 'u32[144,128]{1,0:T(1,128)}', space=vmem, size = 0x12000, scoped, tag = 'internal scratch']
  %s0 = inlined_call_operand.vmem [shape: bf16[512,36], index: 0, kind: input, shape index: {}]
  %s1 = inlined_call_operand.vmem [shape: bf16[36,128], index: 1, kind: input, shape index: {}]
  %s2 = inlined_call_operand.vmem [shape: f32[1,128], index: 2, kind: input, shape index: {}]
  %s3 = inlined_call_operand.vmem [shape: f32[512,8], index: 3, kind: output, shape index: {}]
  %s4 = sld [smem:[#allocation0]]
  $region45: #{conv_subunit_forward.1} parent=0
    _
  %s6 = ssub.s32 1, %s4
  %s7 = scalar_select 0, %s6, %s4
  loop: start=0, step=1, limit=6
  $region2: #{conv_subunit_forward.1} parent=0 // loop_pre_header
    _
  $region3: #{conv_subunit_forward.1} parent=0 // loop_header
    %s9 = sphi 0, %s13
    %p10 = scmp.ge.s32.totalorder %s9, 6
    %s19 = sphi 0, %s21
    %s22 = sphi 0, %s19
    %s23 = sphi 0, %s22
    %s39 = sphi 0, %s23
    %s43 = sphi 0, %s43
    %s45 = sphi 0, %s43
    %s46 = sphi 0, %s45
    %s60 = sphi 0, %s46
    %s64 = sphi 0, %s64
    %s66 = sphi 0, %s64
    %s67 = sphi 0, %s66
    %s81 = sphi 0, %s67
    %s87 = sphi 0, %s89
    %s90 = sphi 0, %s87
    %s91 = sphi 0, %s90
    %s107 = sphi 0, %s91
  $region4: #{conv_subunit_forward.1} parent=0 // loop_header_branch
    %12 = sbr.rel (%p10) target = $region8
  $region5: #{conv_subunit_forward.1} parent=0 // loop_body
    %s14 = ssub.s32 %s9, 1
    %s15 = ssub.s32 %s9, 2
    %s16 = sadd.s32 %s9, 1
    %s17 = ssub.s32 %s9, %s16
    %p18 = scmp.eq.s32.totalorder %s17, 0
    %s20 = sadd.s32 %s19, 1
    %s21 = scalar_select %p18, %s19, %s20
    %p24 = pneg %p18
    %p25 = scmp.eq.s32.totalorder %s9, 3
    %p26 = por %p24, %p25
    %p27 = scmp.ne.s32.totalorder %s19, %s22
    %p28 = scmp.eq.s32.totalorder %s9, 0
    %p29 = por %p27, %p28
    %p30 = scmp.ne.s32.totalorder %s19, %s22
    %p31 = scmp.eq.s32.totalorder %s14, 3
    %p32 = por %p30, %p31
    %p33 = scmp.ne.s32.totalorder %s22, %s23
    %p34 = scmp.eq.s32.totalorder %s14, 0
    %p35 = por %p33, %p34
    %p36 = scmp.ne.s32.totalorder %s22, %s23
    %p37 = scmp.eq.s32.totalorder %s15, 3
    %p38 = por %p36, %p37
    %p40 = scmp.ne.s32.totalorder %s23, %s39
    %p41 = scmp.eq.s32.totalorder %s15, 0
    %p42 = por %p40, %p41
    %s44 = sadd.s32 %s43, 1
    %p47 = scmp.eq.s32.totalorder %s9, 3
    %p48 = scmp.ne.s32.totalorder %s43, %s45
    %p49 = scmp.eq.s32.totalorder %s9, 0
    %p50 = por %p48, %p49
    %p51 = scmp.ne.s32.totalorder %s43, %s45
    %p52 = scmp.eq.s32.totalorder %s14, 3
    %p53 = por %p51, %p52
    %p54 = scmp.ne.s32.totalorder %s45, %s46
    %p55 = scmp.eq.s32.totalorder %s14, 0
    %p56 = por %p54, %p55
    %p57 = scmp.ne.s32.totalorder %s45, %s46
    %p58 = scmp.eq.s32.totalorder %s15, 3
    %p59 = por %p57, %p58
    %p61 = scmp.ne.s32.totalorder %s46, %s60
    %p62 = scmp.eq.s32.totalorder %s15, 0
    %p63 = por %p61, %p62
    %s65 = sadd.s32 %s64, 1
    %p68 = scmp.eq.s32.totalorder %s9, 3
    %p69 = scmp.ne.s32.totalorder %s64, %s66
    %p70 = scmp.eq.s32.totalorder %s9, 0
    %p71 = por %p69, %p70
    %p72 = scmp.ne.s32.totalorder %s64, %s66
    %p73 = scmp.eq.s32.totalorder %s14, 3
    %p74 = por %p72, %p73
    %p75 = scmp.ne.s32.totalorder %s66, %s67
    %p76 = scmp.eq.s32.totalorder %s14, 0
    %p77 = por %p75, %p76
    %p78 = scmp.ne.s32.totalorder %s66, %s67
    %p79 = scmp.eq.s32.totalorder %s15, 3
    %p80 = por %p78, %p79
    %p82 = scmp.ne.s32.totalorder %s67, %s81
    %p83 = scmp.eq.s32.totalorder %s15, 0
    %p84 = por %p82, %p83
    %s85 = ssub.s32 %s9, %s16
    %p86 = scmp.eq.s32.totalorder %s85, 0
    %s88 = sadd.s32 %s87, 1
    %s89 = scalar_select %p86, %s87, %s88
    %p92 = pneg %p86
    %p93 = scmp.eq.s32.totalorder %s9, 3
    %p94 = por %p92, %p93
    %p95 = scmp.ne.s32.totalorder %s87, %s90
    %p96 = scmp.eq.s32.totalorder %s9, 0
    %p97 = por %p95, %p96
    %p98 = scmp.ne.s32.totalorder %s87, %s90
    %p99 = scmp.eq.s32.totalorder %s14, 3
    %p100 = por %p98, %p99
    %p101 = scmp.ne.s32.totalorder %s90, %s91
    %p102 = scmp.eq.s32.totalorder %s14, 0
    %p103 = por %p101, %p102
    %p104 = scmp.ne.s32.totalorder %s90, %s91
    %p105 = scmp.eq.s32.totalorder %s15, 3
    %p106 = por %p104, %p105
    %p108 = scmp.ne.s32.totalorder %s91, %s107
    %p109 = scmp.eq.s32.totalorder %s15, 0
    %p110 = por %p108, %p109
    %p111 = scmp.le.s32.totalorder 1, %s9
    %p112 = scmp.lt.s32.totalorder %s9, 5
    %p113 = pnand %p111, %p112
    %p114 = pneg %p113
    // Predicated region
    $region9: #{conv_subunit_forward.1} parent=5 // pred_check
      _
    $region10: #{conv_subunit_forward.1} parent=5 // pred_check_branch
      %116 = sbr.rel (%p113) target = $region12
    $region11: #{conv_subunit_forward.1} parent=5 // pred_region
      %s117 = ssub.s32 %s9, 1
      // Predicated region
      $region13: #{conv_subunit_forward.1} parent=11 // pred_check
        %p118 = pneg %p56
      $region14: #{conv_subunit_forward.1} parent=11 // pred_check_branch
        %120 = sbr.rel (%p118) target = $region16
      $region15: #{conv_subunit_forward.1} parent=11 // pred_region
        _
      $region16: #{conv_subunit_forward.1} parent=11 // pred_fallthru
        _
      // Predicated region
      $region17: #{conv_subunit_forward.1} parent=11 // pred_check
        %p121 = pneg %p77
      $region18: #{conv_subunit_forward.1} parent=11 // pred_check_branch
        %123 = sbr.rel (%p121) target = $region20
      $region19: #{conv_subunit_forward.1} parent=11 // pred_region
        _
      $region20: #{conv_subunit_forward.1} parent=11 // pred_fallthru
        _
    $region12: #{conv_subunit_forward.1} parent=5 // pred_fallthru
      _
    %p124 = scmp.lt.s32.totalorder %s9, 4
    // Predicated region
    $region21: #{conv_subunit_forward.1} parent=5 // pred_check
      %p125 = pneg %p124
    $region22: #{conv_subunit_forward.1} parent=5 // pred_check_branch
      %127 = sbr.rel (%p125) target = $region24
    $region23: #{conv_subunit_forward.1} parent=5 // pred_region
      // Predicated region
      $region25: #{conv_subunit_forward.1} parent=23 // pred_check
        %p128 = pneg %p29
      $region26: #{conv_subunit_forward.1} parent=23 // pred_check_branch
        %130 = sbr.rel (%p128) target = $region28
      $region27: #{conv_subunit_forward.1} parent=23 // pred_region
        %s131 = smul.u32 16, %s9
        %p132 = scmp.lt.s32.totalorder %s131, 63
        %s133 = scalar_select %p132, %s131, 63
        %s134 = smul.addr %s133, 4
        %s135 = scalar_lea.vmem %s0, %s134
        %s136 = smul.u32 16, %s9
      $region28: #{conv_subunit_forward.1} parent=23 // pred_fallthru
        _
    $region24: #{conv_subunit_forward.1} parent=5 // pred_fallthru
      _
    %p137 = scmp.le.s32.totalorder 1, %s9
    %p138 = scmp.lt.s32.totalorder %s9, 5
    %p139 = pnand %p137, %p138
    %p140 = pneg %p139
    // Predicated region
    $region29: #{conv_subunit_forward.1} parent=5 // pred_check
      _
    $region30: #{conv_subunit_forward.1} parent=5 // pred_check_branch
      %142 = sbr.rel (%p139) target = $region32
    $region31: #{conv_subunit_forward.1} parent=5 // pred_region
      %s143 = ssub.s32 %s9, 1
      %s144 = smul.u32 16, %s14
      %p145 = scmp.lt.s32.totalorder %s144, 63
      %s146 = scalar_select %p145, %s144, 63
      %s147 = smul.addr %s146, 4
      %s148 = scalar_lea.vmem %s0, %s147
      %p149 = pneg %p35
      %p150 = pneg %p32
      %p151 = pneg %p56
      %p152 = pneg %p53
      %p153 = pneg %p77
      %p154 = pneg %p74
      %p155 = pneg %p103
      %p156 = pneg %p100
      %s157 = smul.u32 16, %s14
      %p158 = scmp.lt.s32.totalorder %s157, 63
      %s159 = scalar_select %p158, %s157, 63
      %s160 = smul.addr %s159, 8
      %s161 = scalar_lea.vmem %s3, %s160
      %s162 = smul.u32 16, %s14
      %p163 = scmp.lt.s32.totalorder %s162, 63
      %s164 = scalar_select %p163, %s162, 63
      %s165 = smul.addr %s164, 4
      %s166 = scalar_lea.vmem %s0, %s165
      %s167 = smul.u32 16, %s14
      %s168 = smul.u32 16, %s14
      %p169 = scmp.lt.s32.totalorder %s168, 63
      %s170 = scalar_select %p169, %s168, 63
      %s171 = smul.addr %s170, 8
      %s172 = scalar_lea.vmem %s3, %s171
      %s173 = smul.u32 16, %s14
      %v175 = vld [vmem:[%s166] sm:$0xf]
      %v176 = vld [vmem:[%s166 + $0x4] sm:$0xf]
      %v177 = vld [vmem:[%s166 + $0x8] sm:$0xf]
      %v178 = vld [vmem:[%s166 + $0xc] sm:$0xf]
      %v179 = vld [vmem:[%s166 + $0x10] sm:$0xf]
      %v180 = vld [vmem:[%s166 + $0x14] sm:$0xf]
      %v181 = vld [vmem:[%s166 + $0x18] sm:$0xf]
      %v182 = vld [vmem:[%s166 + $0x1c] sm:$0xf]
      %v183 = vld [vmem:[%s166 + $0x20] sm:$0xf]
      %v184 = vld [vmem:[%s166 + $0x24] sm:$0xf]
      %v185 = vld [vmem:[%s166 + $0x28] sm:$0xf]
      %v186 = vld [vmem:[%s166 + $0x2c] sm:$0xf]
      %v187 = vld [vmem:[%s166 + $0x30] sm:$0xf]
      %v188 = vld [vmem:[%s166 + $0x34] sm:$0xf]
      %v189 = vld [vmem:[%s166 + $0x38] sm:$0xf]
      %v190 = vld [vmem:[%s166 + $0x3c] sm:$0xf]
      %v191 = vld [vmem:[%s1] sm:$0xf]
      %v192 = vld [vmem:[%s1 + $0x4] sm:$0xf]
      %v193 = vld [vmem:[%s1 + $0x8] sm:$0xf]
      %v194 = vld [vmem:[%s1 + $0xc] sm:$0xf]
      %v195 = vld [vmem:[%s1 + $0x10] sm:$0x3]
      %v196 = vld [vmem:[%s2] sm:$0x1]
      %v198 = vlaneseq
      %v199 = vshrl.u32 %v198, 7
      %v200 = vsub.s32 0, %v199
      %v201 = vrot.slane %v196, %v200
      %v219 = vunpack.c.l.b16 %v175
      %v220 = vunpack.c.l.b16 %v176
      %v221 = vunpack.c.l.b16 %v177
      %v222 = vunpack.c.l.b16 %v178
      %v223 = vunpack.c.l.b16 %v179
      %v224 = vunpack.c.l.b16 %v180
      %v225 = vunpack.c.l.b16 %v181
      %v226 = vunpack.c.l.b16 %v182
      %v227 = vunpack.c.l.b16 %v183
      %v228 = vunpack.c.l.b16 %v184
      %v229 = vunpack.c.l.b16 %v185
      %v230 = vunpack.c.l.b16 %v186
      %v231 = vunpack.c.l.b16 %v187
      %v232 = vunpack.c.l.b16 %v188
      %v233 = vunpack.c.l.b16 %v189
      %v234 = vunpack.c.l.b16 %v190
      %v235 = vpack.c.b16 %v220, %v219
      %v236 = vpack.c.b16 %v222, %v221
      %v237 = vpack.c.b16 %v224, %v223
      %v238 = vpack.c.b16 %v226, %v225
      %v239 = vpack.c.b16 %v228, %v227
      %v240 = vpack.c.b16 %v230, %v229
      %v241 = vpack.c.b16 %v232, %v231
      %v242 = vpack.c.b16 %v234, %v233
      %v248 = vunpack.c.l.b16 %v191
      %v249 = vunpack.c.l.b16 %v192
      %v250 = vunpack.c.l.b16 %v193
      %v251 = vunpack.c.l.b16 %v194
      %v252 = vunpack.c.l.b16 %v195
      %v253 = vpack.c.b16 %v249, %v248
      %v254 = vpack.c.b16 %v251, %v250
      %v255 = vpack.c.b16 %v252, %v252
      %vm258 = vcmask 293888
      %v260 = vsel %vm258, %v235, 0
      %v263 = vsel %vm258, %v236, 0
      %v266 = vsel %vm258, %v237, 0
      %v269 = vsel %vm258, %v238, 0
      %v272 = vsel %vm258, %v239, 0
      %v275 = vsel %vm258, %v240, 0
      %v278 = vsel %vm258, %v241, 0
      %v281 = vsel %vm258, %v242, 0
      %vm283 = vcmask 1041408
      %v285 = vsel %vm283, %v255, 0
      %287 = vmatprep.subr.bf16.mxu0 0
      %288 = vmatpush1.bf16.msra.mxu0 0
      %289 = vmatprep.subr.bf16.mxu0 0
      %290 = vmatpush1.bf16.msra.mxu0 0
      %291 = vmatprep.subr.bf16.mxu0 0
      %292 = vmatpush1.bf16.msra.mxu0 0
      %293 = vmatprep.subr.bf16.mxu0 0
      %294 = vmatpush1.bf16.msra.mxu0 0
      %295 = vmatprep.subr.bf16.mxu0 0
      %296 = vmatpush1.bf16.msra.mxu0 0
      %297 = vmatprep.subr.bf16.mxu0 0
      %298 = vmatpush1.bf16.msra.mxu0 %v285
      %299 = vmatprep.subr.bf16.mxu0 0
      %300 = vmatpush1.bf16.msra.mxu0 %v254
      %301 = vmatprep.subr.bf16.mxu0 0
      %302 = vmatpush1.bf16.msra.mxu0 %v253
      %303 = vmatprep.subr.bf16.mxu0 0
      %304 = vmatpush2.bf16.msra.mxu0 0
      %305 = vmatprep.subr.bf16.mxu0 0
      %306 = vmatpush2.bf16.msra.mxu0 0
      %307 = vmatprep.subr.bf16.mxu0 0
      %308 = vmatpush2.bf16.msra.mxu0 0
      %309 = vmatprep.subr.bf16.mxu0 0
      %310 = vmatpush2.bf16.msra.mxu0 0
      %311 = vmatprep.subr.bf16.mxu0 0
      %312 = vmatpush2.bf16.msra.mxu0 0
      %313 = vmatprep.subr.bf16.mxu0 0
      %314 = vmatpush2.bf16.msra.mxu0 0
      %315 = vmatprep.subr.bf16.mxu0 0
      %316 = vmatpush2.bf16.msra.mxu0 0
      %317 = vmatprep.subr.bf16.mxu0 0
      %318 = vmatpush2.bf16.msra.mxu0 0
      %319 = vmatprep.mubr.bf16.mxu0 0
      %320 = vmatmul.mubr.bf16.gmra.mxu0 %v260
      %v321 = vpop.f32.mrf.mxu0
      %v322 = vadd.f32 %v201, %v321
      %v323 = vpop.f32.mrf.mxu0
      %v324 = vpop.f32.mrf.mxu0
      %v325 = vadd.f32 %v201, %v324
      %v326 = vpop.f32.mrf.mxu0
      %327 = vmatprep.mubr.bf16.mxu0 0
      %328 = vmatmul.mubr.bf16.gmra.mxu0 %v263
      %v329 = vpop.f32.mrf.mxu0
      %v330 = vadd.f32 %v201, %v329
      %v331 = vpop.f32.mrf.mxu0
      %v332 = vpop.f32.mrf.mxu0
      %v333 = vadd.f32 %v201, %v332
      %v334 = vpop.f32.mrf.mxu0
      %335 = vmatprep.mubr.bf16.mxu0 0
      %336 = vmatmul.mubr.bf16.gmra.mxu0 %v266
      %v337 = vpop.f32.mrf.mxu0
      %v338 = vadd.f32 %v201, %v337
      %v339 = vpop.f32.mrf.mxu0
      %v340 = vpop.f32.mrf.mxu0
      %v341 = vadd.f32 %v201, %v340
      %v342 = vpop.f32.mrf.mxu0
      %343 = vmatprep.mubr.bf16.mxu0 0
      %344 = vmatmul.mubr.bf16.gmra.mxu0 %v269
      %v345 = vpop.f32.mrf.mxu0
      %v346 = vadd.f32 %v201, %v345
      %v347 = vpop.f32.mrf.mxu0
      %v348 = vpop.f32.mrf.mxu0
      %v349 = vadd.f32 %v201, %v348
      %v350 = vpop.f32.mrf.mxu0
      %351 = vmatprep.mubr.bf16.mxu0 0
      %352 = vmatmul.mubr.bf16.gmra.mxu0 %v272
      %v353 = vpop.f32.mrf.mxu0
      %v354 = vadd.f32 %v201, %v353
      %v355 = vpop.f32.mrf.mxu0
      %v356 = vpop.f32.mrf.mxu0
      %v357 = vadd.f32 %v201, %v356
      %v358 = vpop.f32.mrf.mxu0
      %359 = vmatprep.mubr.bf16.mxu0 0
      %360 = vmatmul.mubr.bf16.gmra.mxu0 %v275
      %v361 = vpop.f32.mrf.mxu0
      %v362 = vadd.f32 %v201, %v361
      %v363 = vpop.f32.mrf.mxu0
      %v364 = vpop.f32.mrf.mxu0
      %v365 = vadd.f32 %v201, %v364
      %v366 = vpop.f32.mrf.mxu0
      %367 = vmatprep.mubr.bf16.mxu0 0
      %368 = vmatmul.mubr.bf16.gmra.mxu0 %v278
      %v369 = vpop.f32.mrf.mxu0
      %v370 = vadd.f32 %v201, %v369
      %v371 = vpop.f32.mrf.mxu0
      %v372 = vpop.f32.mrf.mxu0
      %v373 = vadd.f32 %v201, %v372
      %v374 = vpop.f32.mrf.mxu0
      %375 = vmatprep.mubr.bf16.mxu0 0
      %376 = vmatmul.mubr.bf16.gmra.mxu0 %v281
      %v377 = vpop.f32.mrf.mxu0
      %v378 = vadd.f32 %v201, %v377
      %v379 = vpop.f32.mrf.mxu0
      %v380 = vpop.f32.mrf.mxu0
      %v381 = vadd.f32 %v201, %v380
      %v382 = vpop.f32.mrf.mxu0
      %383 = vdwg.mxu0
      %v384 = vmax.f32 %v322, 0.0
      %v385 = vmax.f32 %v325, 0.0
      %v386 = vmax.f32 %v330, 0.0
      %v387 = vmax.f32 %v333, 0.0
      %v388 = vmax.f32 %v338, 0.0
      %v389 = vmax.f32 %v341, 0.0
      %v390 = vmax.f32 %v346, 0.0
      %v391 = vmax.f32 %v349, 0.0
      %v392 = vmax.f32 %v354, 0.0
      %v393 = vmax.f32 %v357, 0.0
      %v394 = vmax.f32 %v362, 0.0
      %v395 = vmax.f32 %v365, 0.0
      %v396 = vmax.f32 %v370, 0.0
      %v397 = vmax.f32 %v373, 0.0
      %v398 = vmax.f32 %v378, 0.0
      %v399 = vmax.f32 %v381, 0.0
      %vm400 = vcmask 64512
      %401 = vst.msk [vmem:[%s172] sm:$0xff] %vm400, %v384
      %402 = vst.msk [vmem:[%s172 + $0x8] sm:$0xff] %vm400, %v385
      %403 = vst.msk [vmem:[%s172 + $0x10] sm:$0xff] %vm400, %v386
      %404 = vst.msk [vmem:[%s172 + $0x18] sm:$0xff] %vm400, %v387
      %405 = vst.msk [vmem:[%s172 + $0x20] sm:$0xff] %vm400, %v388
      %406 = vst.msk [vmem:[%s172 + $0x28] sm:$0xff] %vm400, %v389
      %407 = vst.msk [vmem:[%s172 + $0x30] sm:$0xff] %vm400, %v390
      %408 = vst.msk [vmem:[%s172 + $0x38] sm:$0xff] %vm400, %v391
      %409 = vst.msk [vmem:[%s172 + $0x40] sm:$0xff] %vm400, %v392
      %410 = vst.msk [vmem:[%s172 + $0x48] sm:$0xff] %vm400, %v393
      %411 = vst.msk [vmem:[%s172 + $0x50] sm:$0xff] %vm400, %v394
      %412 = vst.msk [vmem:[%s172 + $0x58] sm:$0xff] %vm400, %v395
      %413 = vst.msk [vmem:[%s172 + $0x60] sm:$0xff] %vm400, %v396
      %414 = vst.msk [vmem:[%s172 + $0x68] sm:$0xff] %vm400, %v397
      %415 = vst.msk [vmem:[%s172 + $0x70] sm:$0xff] %vm400, %v398
      %416 = vst.msk [vmem:[%s172 + $0x78] sm:$0xff] %vm400, %v399
      %s417 = smul.u32 16, %s14
      %p418 = scmp.lt.s32.totalorder %s417, 63
      %s419 = scalar_select %p418, %s417, 63
      %s420 = smul.addr %s419, 8
      %s421 = scalar_lea.vmem %s3, %s420
      // Predicated region
      $region33: #{conv_subunit_forward.1} parent=31 // pred_check
        %p422 = pneg %p100
      $region34: #{conv_subunit_forward.1} parent=31 // pred_check_branch
        %424 = sbr.rel (%p422) target = $region36
      $region35: #{conv_subunit_forward.1} parent=31 // pred_region
        %s425 = smul.u32 16, %s14
      $region36: #{conv_subunit_forward.1} parent=31 // pred_fallthru
        _
    $region32: #{conv_subunit_forward.1} parent=5 // pred_fallthru
      _
    %p426 = scmp.le.s32.totalorder 2, %s9
    // Predicated region
    $region37: #{conv_subunit_forward.1} parent=5 // pred_check
      %p427 = pneg %p426
    $region38: #{conv_subunit_forward.1} parent=5 // pred_check_branch
      %429 = sbr.rel (%p427) target = $region40
    $region39: #{conv_subunit_forward.1} parent=5 // pred_region
      %s430 = ssub.s32 %s9, 2
      // Predicated region
      $region41: #{conv_subunit_forward.1} parent=39 // pred_check
        %p431 = pneg %p106
      $region42: #{conv_subunit_forward.1} parent=39 // pred_check_branch
        %433 = sbr.rel (%p431) target = $region44
      $region43: #{conv_subunit_forward.1} parent=39 // pred_region
        %s434 = smul.u32 16, %s15
        %p435 = scmp.lt.s32.totalorder %s434, 63
        %s436 = scalar_select %p435, %s434, 63
        %s437 = smul.addr %s436, 8
        %s438 = scalar_lea.vmem %s3, %s437
      $region44: #{conv_subunit_forward.1} parent=39 // pred_fallthru
        _
    $region40: #{conv_subunit_forward.1} parent=5 // pred_fallthru
      _
  $region6: #{conv_subunit_forward.1} parent=0 // loop_footer
    %s13 = sadd.s32 1, %s9
  $region7: #{conv_subunit_forward.1} parent=0 // loop_footer_branch
    %8 = sbr.rel target = $region3
  $region8: #{conv_subunit_forward.1} parent=0 // loop_exit
    _

</llo_original>
